<compile_context>
chip_gen: v7x
topology: tpu7x:2x2x1
jax: 0.10.0
libtpu: 0.0.40
codegen_flags: <defaults>
</compile_context>

<pallas_src>
import jax
import jax.numpy as jnp
from jax.experimental import pallas as pl
from jax.experimental.pallas import tpu as pltpu

LANES = 128
_MIN_PALLAS_ELEMS = 1 << 20        # below this, plain XLA fusion wins


def _round_up(x, m):
    return (x + m - 1) // m * m


def _vmem_budget():
    """Generation-aware (block_bytes, vmem_limit_bytes)."""
    vmem = None
    try:
        info = pltpu.get_tpu_info()
        for attr in ("vmem_capacity_bytes", "vmem_bytes", "vmem_size_bytes"):
            v = getattr(info, attr, None)
            if v:
                vmem = int(v)
                break
    except Exception:
        vmem = None
    if vmem is None:
        vmem = 64 << 20                      # conservative (v7x-sized)
    if vmem <= (64 << 20):                   # v7x: 64 MiB physical per TC
        return 8 << 20, 48 << 20             # 4 x 8 MiB double-buffered = 32 MiB
    # v5e / v6e: 128 MiB physical VMEM; raise the scoped limit explicitly so
    # we never silently exceed the 16/32 MiB scoped defaults.
    return 8 << 20, 64 << 20


def _pick_block_rows(rows, target_rows):
    """Choose a sublane-aligned row block.

    Guarantees >= 2 grid steps when rows > 8 (megacore DMA split on v7x) and
    prefers a block that evenly divides rows (no masked partial last block).
    """
    if rows <= 8:
        return rows                          # full dim: passes (8,128) rule
    cap = max(8, min(target_rows, _round_up((rows + 1) // 2, 8)))
    cap = cap // 8 * 8
    lo = max(8, (cap // 2) // 8 * 8)
    for br in range(cap, lo - 1, -8):        # prefer largest exact divisor
        if rows % br == 0:
            return br
    return cap                               # ragged last block is masked


def _scale_kernel(s_ref, x_ref, o_ref):
    # Scalar is f32 in SMEM; cast once per block to the output dtype so bf16
    # inputs multiply natively in bf16 (v6e/v7x VPU) — no f32 temporaries.
    o_ref[...] = x_ref[...] * s_ref[0].astype(o_ref.dtype)


def _scale_2d(x2d, s, block_rows, vmem_limit_bytes):
    rows, width = x2d.shape
    grid = (pl.cdiv(rows, block_rows),)
    return pl.pallas_call(
        _scale_kernel,
        out_shape=jax.ShapeDtypeStruct(x2d.shape, x2d.dtype),
        grid=grid,
        in_specs=[
            pl.BlockSpec(memory_space=pltpu.SMEM),              # s: (1,) f32
            pl.BlockSpec((block_rows, width), lambda i: (i, 0)),
        ],
        out_specs=pl.BlockSpec((block_rows, width), lambda i: (i, 0)),
        compiler_params=pltpu.CompilerParams(
            dimension_semantics=("parallel",),
            vmem_limit_bytes=vmem_limit_bytes),
    )(s, x2d)


class LambdaLayer:
    """JAX/Pallas port of methods/r2d2.py::LambdaLayer (forward only)."""

    def __init__(self, learn_lambda=False, init_lambda=1, base=1):
        # torch.FloatTensor([init_lambda]) -> shape (1,) float32.
        # TODO(synk): learn_lambda only marks `l` trainable in torch; forward
        # math is identical, so it is a no-op here.
        self.l = jnp.array([init_lambda], dtype=jnp.float32)
        self.base = base
        self.learn_lambda = learn_lambda

    def _scalar(self):
        if self.base == 1:
            return self.l
        # Hoisted out of the kernel: one scalar pow per call instead of one
        # per grid step.  (Negative `base` with non-integer l gives NaN,
        # matching the PyTorch reference.)
        return jnp.power(jnp.float32(self.base), self.l)

    def __call__(self, x, *, force_pallas=False):
        x = jnp.asarray(x)
        if not jnp.issubdtype(x.dtype, jnp.floating):
            x = x.astype(jnp.float32)
        s = self._scalar()                    # (1,) float32
        n = x.size
        if n == 0:
            return x

        # Ragged element counts: pad + kernel + slice would triple the HBM
        # traffic of a bandwidth-bound op — plain XLA multiply is faster.
        if n % LANES != 0:
            return (x * s[0]).astype(x.dtype)

        if (not force_pallas) and n < _MIN_PALLAS_ELEMS:
            # Tiny input: kernel launch + pipeline setup dwarfs the work.
            return (x * s[0]).astype(x.dtype)

        # ---- build a lane-dense 2D slab --------------------------------
        width = LANES
        for cand in (1024, 512, 256, 128):    # prefer wide, unmasked stores
            if n % cand == 0:
                width = cand
                break
        x2d = x.reshape(-1, width)
        rows = x2d.shape[0]

        # ---- pick a large, generation-aware row block ------------------
        block_bytes, vmem_limit = _vmem_budget()
        itemsize = x2d.dtype.itemsize
        target_rows = max(8, (block_bytes // (width * itemsize)) // 8 * 8)
        block_rows = _pick_block_rows(rows, target_rows)

        y2d = _scale_2d(x2d, s, block_rows, vmem_limit)
        return y2d.reshape(x.shape)


if __name__ == "__main__":
    key = jax.random.PRNGKey(0)
    k0, k1, k2 = jax.random.split(key, 3)
    # NCHW feature map, consistent with LambdaLayer's use on conv features.
    x = jax.random.normal(k0, (2, 4, 16, 16), dtype=jnp.float32)

    # base == 1 branch: y = x * l   (force the Pallas path at this small size)
    layer = LambdaLayer(learn_lambda=False, init_lambda=1.0, base=1)
    y = layer(x, force_pallas=True)
    jax.block_until_ready(y)
    ref = x * layer.l[0]
    assert y.shape == x.shape and y.dtype == x.dtype
    assert jnp.allclose(y, ref, atol=1e-6, rtol=1e-6)

    # base != 1 branch: y = x * base**l  (scalar pow folded into the wrapper)
    layer2 = LambdaLayer(learn_lambda=True, init_lambda=0.5, base=2)
    y2 = layer2(x, force_pallas=True)
    jax.block_until_ready(y2)
    ref2 = x * (2.0 ** 0.5)
    assert jnp.allclose(y2, ref2, atol=1e-5, rtol=1e-5)

    # bf16 input with a multi-step grid (rows > 8) exercises the native-bf16
    # multiply path and the even-divisor block selection.
    xb = jax.random.normal(k1, (8, 4, 32, 32), dtype=jnp.float32).astype(jnp.bfloat16)
    yb = layer2(xb, force_pallas=True)
    jax.block_until_ready(yb)
    refb = (xb.astype(jnp.float32) * (2.0 ** 0.5)).astype(jnp.bfloat16)
    assert yb.dtype == jnp.bfloat16 and yb.shape == xb.shape
    assert jnp.allclose(yb.astype(jnp.float32), refb.astype(jnp.float32),
                        atol=2e-2, rtol=2e-2)

    # Ragged (non multiple-of-128) element count takes the XLA fallback.
    x3 = jax.random.normal(k2, (3, 5, 7, 11), dtype=jnp.float32)
    y3 = layer2(x3, force_pallas=True)
    jax.block_until_ready(y3)
    assert jnp.allclose(y3, x3 * (2.0 ** 0.5), atol=1e-5, rtol=1e-5)

    # Small-input fast path (plain JAX, no Pallas) agrees as well.
    y4 = layer(x)
    assert jnp.allclose(y4, ref, atol=1e-6, rtol=1e-6)

    print("KERNEL_OK")
</pallas_src>

<mosaic_0001>
module attributes {stable_mosaic.version = 11 : i64} {
  func.func @_scale_kernel(%arg0: i32, %arg1: memref<1xf32, #tpu.memory_space<smem>>, %arg2: memref<2x1024xf32, #tpu.memory_space<vmem>>, %arg3: memref<2x1024xf32, #tpu.memory_space<vmem>>) attributes {dimension_semantics = [#tpu.dimension_semantics<parallel>], iteration_bounds = array<i64: 1>, scalar_prefetch = 0 : i64, scratch_operands = 0 : i64, tpu.core_type = #tpu.core_type<tc>, window_params = [{transform_indices = @transform_0, window_bounds = array<i64: 1>}, {transform_indices = @transform_1, window_bounds = array<i64: 2, 1024>}, {transform_indices = @transform_2, window_bounds = array<i64: 2, 1024>}]} {
    %c0 = arith.constant 0 : index
    %c0_0 = arith.constant 0 : index
    %0 = vector.load %arg2[%c0, %c0_0] : memref<2x1024xf32, #tpu.memory_space<vmem>>, vector<2x1024xf32>
    %c0_1 = arith.constant 0 : index
    %1 = memref.load %arg1[%c0_1] : memref<1xf32, #tpu.memory_space<smem>>
    %2 = vector.broadcast %1 : f32 to vector<2x1024xf32>
    %3 = arith.mulf %0, %2 : vector<2x1024xf32>
    %c0_2 = arith.constant 0 : index
    %c0_3 = arith.constant 0 : index
    %4 = vector.load %arg3[%c0_2, %c0_3] : memref<2x1024xf32, #tpu.memory_space<vmem>>, vector<2x1024xf32>
    tpu.vector_store %arg3[%c0_2, %c0_3], %3 {strides = array<i32>} : memref<2x1024xf32, #tpu.memory_space<vmem>>, vector<2x1024xf32>,
    return
  }
  func.func @transform_0(%arg0: i32) -> i32 {
    %c0_i32 = arith.constant 0 : i32
    %c0_i32_0 = arith.constant 0 : i32
    return %c0_i32 : i32
  }
  func.func @transform_1(%arg0: i32) -> (i32, i32) {
    %c0_i32 = arith.constant 0 : i32
    %c0_i32_0 = arith.constant 0 : i32
    return %arg0, %c0_i32 : i32, i32
  }
  func.func @transform_2(%arg0: i32) -> (i32, i32) {
    %c0_i32 = arith.constant 0 : i32
    %c0_i32_0 = arith.constant 0 : i32
    return %arg0, %c0_i32 : i32, i32
  }
}

</mosaic_0001>

<llo_original>
// kernel: tpu_custom_call.1
$region0: #{tpu_custom_call.1}
  #allocation0 [shape = 'u32[]', space=smem, size = 0x4, offset = 0x4, fixed_abs, tag = 'smem constant byte address 0x4 - core index']
  #allocation1 [shape = 'u32[144,128]{1,0:T(1,128)}', space=vmem, size = 0x12000, scoped, tag = 'internal scratch']
  #allocation2 [shape = 'f32[1]{0:T(128)S(6)}', space=smem, size = 0x200, scoped, tag = 'scoped memory for tpu_custom_call.1']
  %s0 = inlined_call_operand.<no memory space> [shape: f32[1], index: 0, kind: input, shape index: {}]
  %s1 = inlined_call_operand.hbm [shape: f32[2,1024], index: 1, kind: input, shape index: {}]
  %s2 = inlined_call_operand.hbm [shape: f32[2,1024], index: 2, kind: output, shape index: {}]
  %s3 = sld [smem:[#allocation0]]
  $region22: #{tpu_custom_call.1} parent=0
    _
  %s5 = ssub.s32 1, %s3
  %s6 = scalar_select 0, %s5, %s3
  %7 = sst [smem:[#allocation2]] %s0
  $region1: #{tpu_custom_call.1} parent=0
    #allocation3 [shape = 'u8[8192]{0}', space=vmem, size = 0x2000, scoped, tag = 'input window, operand 1, single buffered']
    #allocation4 [shape = 's32[1]{0}', space=sflag, size = 0x4, scoped, tag = 'scoped memory for tpu_custom_call.1']
    #allocation5 [shape = 's32[1]{0}', space=sflag, size = 0x4, scoped, tag = 'scoped memory for tpu_custom_call.1']
    #allocation6 [shape = 'u8[8192]{0}', space=vmem, size = 0x2000, scoped, tag = 'output window, operand 0, single buffered']
    %8 = vsyncpa [#allocation4], 0
    %9 = vsyncpa [#allocation5], 0
    // Predicated region
    $region2: #{tpu_custom_call.1} parent=1 // pred_check
      _
    $region3: #{tpu_custom_call.1} parent=1 // pred_check_branch
      %11 = sbr.rel (0) target = $region5
    $region4: #{tpu_custom_call.1} parent=1 // pred_region
      _
    $region5: #{tpu_custom_call.1} parent=1 // pred_fallthru
      _
    // Predicated region
    $region6: #{tpu_custom_call.1} parent=1 // pred_check
      _
    $region7: #{tpu_custom_call.1} parent=1 // pred_check_branch
      %13 = sbr.rel (0) target = $region9
    $region8: #{tpu_custom_call.1} parent=1 // pred_region
      %s15 = ssub.s32 256, 256
      %16 = vsyncadd [#allocation4], %s15
      %s18 = sshll.u32 [#allocation3], 4
      %s19 = int_to_ptr.vmem [resolvable:$true] %s18
      %21 = dma.hbm_to_vmem [thread:$0]  %s1, 256, %s19, [#allocation4]
    $region9: #{tpu_custom_call.1} parent=1 // pred_fallthru
      _
    // Predicated region
    $region10: #{tpu_custom_call.1} parent=1 // pred_check
      _
    $region11: #{tpu_custom_call.1} parent=1 // pred_check_branch
      %23 = sbr.rel (0) target = $region13
    $region12: #{tpu_custom_call.1} parent=1 // pred_region
      %24 = dma.done [#allocation4], 256
    $region13: #{tpu_custom_call.1} parent=1 // pred_fallthru
      _
    %v25 = vld [vmem:[#allocation3] sm:$0xff]
    %v26 = vld [vmem:[#allocation3 + $0x8] sm:$0xff]
    %s27 = sld [smem:[#allocation2]]
    %v28 = vstv %s27
    %v29 = vmul.f32 %v25, %v28
    %v30 = vmul.f32 %v26, %v28
    %31 = vst [vmem:[#allocation6] sm:$0xff] %v29
    %32 = vst [vmem:[#allocation6 + $0x8] sm:$0xff] %v30
    // Predicated region
    $region14: #{tpu_custom_call.1} parent=1 // pred_check
      _
    $region15: #{tpu_custom_call.1} parent=1 // pred_check_branch
      %34 = sbr.rel (0) target = $region17
    $region16: #{tpu_custom_call.1} parent=1 // pred_region
      %s36 = ssub.s32 256, 256
      %37 = vsyncadd [#allocation5], %s36
      %s39 = sshll.u32 [#allocation6], 4
      %s40 = int_to_ptr.vmem [resolvable:$true] %s39
      %42 = dma.vmem_to_hbm [thread:$0]  %s40, 256, %s2, [#allocation5]
    $region17: #{tpu_custom_call.1} parent=1 // pred_fallthru
      _
    // Predicated region
    $region18: #{tpu_custom_call.1} parent=1 // pred_check
      _
    $region19: #{tpu_custom_call.1} parent=1 // pred_check_branch
      %44 = sbr.rel (0) target = $region21
    $region20: #{tpu_custom_call.1} parent=1 // pred_region
      %45 = dma.done [#allocation5], 256
    $region21: #{tpu_custom_call.1} parent=1 // pred_fallthru
      _
    %46 = vsyncpa [#allocation4], 1
    %47 = vsyncpa [#allocation5], 1

</llo_original>
